<compile_context>
chip_gen: v5e
topology: v5e:2x2
jax: 0.10.0
libtpu: 0.0.40
codegen_flags: <defaults>
</compile_context>

<pallas_src>
import functools

import jax
import jax.numpy as jnp
from jax.experimental import pallas as pl
from jax.experimental.pallas import tpu as pltpu

INPUT_DIM = 320
LEAKY_SLOPE = 0.01   # torch.nn.LeakyReLU default
LANE = 128
NEG_LARGE = -1e30    # bias for padded label columns -> exp() underflows to 0


def _leaky_relu(x):
    return jnp.where(x > 0, x, LEAKY_SLOPE * x)


def _round_up(n, m):
    return ((n + m - 1) // m) * m


def mlp_kernel(x_ref, w1_ref, b1_ref, w2_ref, b2_ref, w3_ref, b3_ref, o_ref,
               *, apply_softmax):
    # x_ref: (TB, 320) f32 -> cast to bf16 here (VPU slot has slack under the
    # MXU-bound regime; avoids a separate XLA pad/cast pass over x in HBM).
    x = x_ref[...].astype(jnp.bfloat16)

    # Layer 1: Linear(320->320) + LeakyReLU  (bf16 operands, f32 accumulate)
    h = jnp.dot(x, w1_ref[...], preferred_element_type=jnp.float32) + b1_ref[...]
    h = _leaky_relu(h)

    # Layer 2: Linear(320->320) + LeakyReLU
    h = jnp.dot(h.astype(jnp.bfloat16), w2_ref[...],
                preferred_element_type=jnp.float32) + b2_ref[...]
    h = _leaky_relu(h)

    # Layer 3: Linear(320->labels_padded)
    logits = jnp.dot(h.astype(jnp.bfloat16), w3_ref[...],
                     preferred_element_type=jnp.float32) + b3_ref[...]

    if apply_softmax:
        # Padded label columns carry bias -1e30 -> exp(...) == 0, so the
        # softmax is exactly over the real labels.
        m = jnp.max(logits, axis=-1, keepdims=True)
        e = jnp.exp(logits - m)
        s = jnp.sum(e, axis=-1, keepdims=True)
        # Exact division (not approx reciprocal) so rows sum to 1 in f32;
        # cast to the output dtype only after normalization.
        o_ref[...] = (e / s).astype(o_ref.dtype)
    else:
        o_ref[...] = logits.astype(o_ref.dtype)


def mlp_forward(x, params, *, apply_softmax=True, block_b=1024,
                out_dtype=jnp.bfloat16):
    """x: (B, 320) f32; params: w1,b1,w2,b2,w3,b3 with weights in (in, out) layout.

    apply_softmax selects the 'class'/'multi' task variant (static flag);
    apply_softmax=False returns raw logits (regression task).
    """
    B, D = x.shape
    labels = params["w3"].shape[1]
    lp = _round_up(labels, LANE)                 # lane-dense output width

    # ---- batch tiling ---------------------------------------------------
    b8 = _round_up(B, 8)
    tb = min(block_b, b8)                        # batch tile (multiple of 8)
    # v7x has 2 TensorCores: once the batch is big enough, keep >= 2 parallel
    # grid blocks so both cores get work (weights are tiny; duplicating the
    # resident copies per-core VMEM is free).
    if b8 <= block_b and b8 >= 512:
        tb = _round_up(pl.cdiv(b8, 2), 8)
    b_pad = _round_up(B, tb)
    n_blocks = b_pad // tb

    # Pad only the batch tail (f32; the bf16 cast happens inside the kernel so
    # x is streamed from HBM exactly once, by the kernel's own DMA).
    x_p = x.astype(jnp.float32)
    if b_pad != B:
        x_p = jnp.pad(x_p, ((0, b_pad - B), (0, 0)))

    w1 = params["w1"].astype(jnp.bfloat16)
    w2 = params["w2"].astype(jnp.bfloat16)
    b1 = params["b1"].astype(jnp.float32)
    b2 = params["b2"].astype(jnp.float32)
    # Pad label dim to a full lane: zero weight columns; padded bias = -1e30
    # when softmax is applied so those columns contribute nothing.
    pad_bias = NEG_LARGE if apply_softmax else 0.0
    w3 = jnp.pad(params["w3"], ((0, 0), (0, lp - labels))).astype(jnp.bfloat16)
    b3 = jnp.pad(params["b3"].astype(jnp.float32),
                 ((0, 0), (0, lp - labels)), constant_values=pad_bias)

    # Resident (weights/biases): constant index_map -> loaded once, reused
    # across all grid steps.
    resident = lambda shape: pl.BlockSpec(shape, lambda i: (0, 0))

    out_itemsize = jnp.dtype(out_dtype).itemsize
    flops = 2 * b_pad * D * (D + D + lp)
    transcendentals = b_pad * lp if apply_softmax else 0
    bytes_accessed = (x_p.size * 4
                      + (w1.size + w2.size + w3.size) * 2
                      + (b1.size + b2.size + b3.size) * 4
                      + b_pad * lp * out_itemsize)

    out = pl.pallas_call(
        functools.partial(mlp_kernel, apply_softmax=apply_softmax),
        out_shape=jax.ShapeDtypeStruct((b_pad, lp), out_dtype),
        grid=(n_blocks,),
        in_specs=[
            pl.BlockSpec((tb, D), lambda i: (i, 0)),   # streamed x tiles
            resident(w1.shape),
            resident(b1.shape),
            resident(w2.shape),
            resident(b2.shape),
            resident(w3.shape),
            resident(b3.shape),
        ],
        out_specs=pl.BlockSpec((tb, lp), lambda i: (i, 0)),
        compiler_params=pltpu.CompilerParams(
            dimension_semantics=("parallel",),
            vmem_limit_bytes=32 << 20,
        ),
        cost_estimate=pl.CostEstimate(
            flops=flops,
            transcendentals=transcendentals,
            bytes_accessed=bytes_accessed,
        ),
    )(x_p, w1, b1, w2, b2, w3, b3)

    return out[:B, :labels]


def init_params(key, in_dim=INPUT_DIM, hidden=INPUT_DIM, labels=2):
    """Deterministic PyTorch-Linear-style init: U(-1/sqrt(fan_in), 1/sqrt(fan_in))."""
    ks = jax.random.split(key, 6)

    def lin(kw, kb, fan_in, fan_out):
        bound = 1.0 / jnp.sqrt(fan_in)
        w = jax.random.uniform(kw, (fan_in, fan_out), jnp.float32, -bound, bound)
        b = jax.random.uniform(kb, (1, fan_out), jnp.float32, -bound, bound)
        return w, b

    w1, b1 = lin(ks[0], ks[1], in_dim, hidden)
    w2, b2 = lin(ks[2], ks[3], hidden, hidden)
    w3, b3 = lin(ks[4], ks[5], hidden, labels)
    return {"w1": w1, "b1": b1, "w2": w2, "b2": b2, "w3": w3, "b3": b3}


def reference_forward(x, p, apply_softmax=True):
    """Pure-JAX reference with the same bf16-operand / f32-accumulate precision."""
    def bf16_dot(a, w):
        return jax.lax.dot_general(
            a.astype(jnp.bfloat16), w.astype(jnp.bfloat16),
            dimension_numbers=(((1,), (0,)), ((), ())),
            preferred_element_type=jnp.float32)

    h = _leaky_relu(bf16_dot(x, p["w1"]) + p["b1"])
    h = _leaky_relu(bf16_dot(h, p["w2"]) + p["b2"])
    logits = bf16_dot(h, p["w3"]) + p["b3"]
    if apply_softmax:
        return jax.nn.softmax(logits, axis=-1)
    return logits


if __name__ == "__main__":
    key = jax.random.PRNGKey(0)
    k_x, k_p = jax.random.split(key)

    batch = 16    # small demo batch (any B works; the kernel tiles/pads internally)
    labels = 2    # binary classification ('class' task) -> softmax over 2 logits

    x = jax.random.normal(k_x, (batch, INPUT_DIM), jnp.float32)
    params = init_params(k_p, labels=labels)

    # Classification variant ('class'/'multi' task): softmax epilogue, bf16 out.
    out = jax.block_until_ready(
        mlp_forward(x, params, apply_softmax=True, out_dtype=jnp.bfloat16))
    ref = reference_forward(x, params, apply_softmax=True)
    assert out.shape == (batch, labels)
    out_f32 = out.astype(jnp.float32)
    assert jnp.allclose(jnp.sum(out_f32, axis=-1), 1.0, atol=1e-2), "softmax rows != 1"
    assert jnp.allclose(out_f32, ref, atol=1e-2, rtol=1e-2), "softmax output mismatch"

    # Regression variant ('reg' task): raw logits, f32 output.
    out_r = jax.block_until_ready(
        mlp_forward(x, params, apply_softmax=False, out_dtype=jnp.float32))
    ref_r = reference_forward(x, params, apply_softmax=False)
    assert out_r.shape == (batch, labels)
    assert jnp.allclose(out_r, ref_r, atol=5e-3, rtol=5e-3), "logit output mismatch"

    print("KERNEL_OK")
</pallas_src>

<mosaic_0001>
module attributes {stable_mosaic.version = 11 : i64} {
  func.func @mlp_kernel(%arg0: i32, %arg1: memref<16x320xf32, #tpu.memory_space<vmem>>, %arg2: memref<320x320xbf16, #tpu.memory_space<vmem>>, %arg3: memref<1x320xf32, #tpu.memory_space<vmem>>, %arg4: memref<320x320xbf16, #tpu.memory_space<vmem>>, %arg5: memref<1x320xf32, #tpu.memory_space<vmem>>, %arg6: memref<320x128xbf16, #tpu.memory_space<vmem>>, %arg7: memref<1x128xf32, #tpu.memory_space<vmem>>, %arg8: memref<16x128xbf16, #tpu.memory_space<vmem>>) attributes {dimension_semantics = [#tpu.dimension_semantics<parallel>], iteration_bounds = array<i64: 1>, scalar_prefetch = 0 : i64, scratch_operands = 0 : i64, tpu.core_type = #tpu.core_type<tc>, window_params = [{transform_indices = @transform_0, window_bounds = array<i64: 16, 320>}, {pipeline_mode = #tpu.pipeline_mode<synchronous>, transform_indices = @transform_1, window_bounds = array<i64: 320, 320>}, {pipeline_mode = #tpu.pipeline_mode<synchronous>, transform_indices = @transform_2, window_bounds = array<i64: 1, 320>}, {pipeline_mode = #tpu.pipeline_mode<synchronous>, transform_indices = @transform_3, window_bounds = array<i64: 320, 320>}, {pipeline_mode = #tpu.pipeline_mode<synchronous>, transform_indices = @transform_4, window_bounds = array<i64: 1, 320>}, {pipeline_mode = #tpu.pipeline_mode<synchronous>, transform_indices = @transform_5, window_bounds = array<i64: 320, 128>}, {pipeline_mode = #tpu.pipeline_mode<synchronous>, transform_indices = @transform_6, window_bounds = array<i64: 1, 128>}, {transform_indices = @transform_7, window_bounds = array<i64: 16, 128>}]} {
    %c0 = arith.constant 0 : index
    %c0_0 = arith.constant 0 : index
    %0 = vector.load %arg1[%c0, %c0_0] : memref<16x320xf32, #tpu.memory_space<vmem>>, vector<16x320xf32>
    %1 = arith.truncf %0 : vector<16x320xf32> to vector<16x320xbf16>
    %c0_1 = arith.constant 0 : index
    %c0_2 = arith.constant 0 : index
    %2 = vector.load %arg2[%c0_1, %c0_2] : memref<320x320xbf16, #tpu.memory_space<vmem>>, vector<320x320xbf16>
    %cst = arith.constant dense<0.000000e+00> : vector<16x320xf32>
    %3 = tpu.matmul %1, %2, %cst {dimension_numbers = #tpu.dot_dimension_numbers<[1], [0], [0], [1], [0, 0, 1, 1], [], []>} : vector<16x320xbf16>, vector<320x320xbf16>, vector<16x320xf32> -> vector<16x320xf32>
    %c0_3 = arith.constant 0 : index
    %c0_4 = arith.constant 0 : index
    %4 = vector.load %arg3[%c0_3, %c0_4] : memref<1x320xf32, #tpu.memory_space<vmem>>, vector<1x320xf32>
    %5 = vector.broadcast %4 : vector<1x320xf32> to vector<16x320xf32>
    %6 = arith.addf %3, %5 : vector<16x320xf32>
    %cst_5 = arith.constant 0.000000e+00 : f32
    %7 = vector.broadcast %cst_5 : f32 to vector<16x320xf32>
    %8 = arith.cmpf ogt, %6, %7 : vector<16x320xf32>
    %cst_6 = arith.constant 0.00999999977 : f32
    %9 = vector.broadcast %cst_6 : f32 to vector<16x320xf32>
    %10 = arith.mulf %9, %6 : vector<16x320xf32>
    %11 = arith.select %8, %6, %10 : vector<16x320xi1>, vector<16x320xf32>
    %12 = arith.truncf %11 : vector<16x320xf32> to vector<16x320xbf16>
    %c0_7 = arith.constant 0 : index
    %c0_8 = arith.constant 0 : index
    %13 = vector.load %arg4[%c0_7, %c0_8] : memref<320x320xbf16, #tpu.memory_space<vmem>>, vector<320x320xbf16>
    %cst_9 = arith.constant dense<0.000000e+00> : vector<16x320xf32>
    %14 = tpu.matmul %12, %13, %cst_9 {dimension_numbers = #tpu.dot_dimension_numbers<[1], [0], [0], [1], [0, 0, 1, 1], [], []>} : vector<16x320xbf16>, vector<320x320xbf16>, vector<16x320xf32> -> vector<16x320xf32>
    %c0_10 = arith.constant 0 : index
    %c0_11 = arith.constant 0 : index
    %15 = vector.load %arg5[%c0_10, %c0_11] : memref<1x320xf32, #tpu.memory_space<vmem>>, vector<1x320xf32>
    %16 = vector.broadcast %15 : vector<1x320xf32> to vector<16x320xf32>
    %17 = arith.addf %14, %16 : vector<16x320xf32>
    %cst_12 = arith.constant 0.000000e+00 : f32
    %18 = vector.broadcast %cst_12 : f32 to vector<16x320xf32>
    %19 = arith.cmpf ogt, %17, %18 : vector<16x320xf32>
    %cst_13 = arith.constant 0.00999999977 : f32
    %20 = vector.broadcast %cst_13 : f32 to vector<16x320xf32>
    %21 = arith.mulf %20, %17 : vector<16x320xf32>
    %22 = arith.select %19, %17, %21 : vector<16x320xi1>, vector<16x320xf32>
    %23 = arith.truncf %22 : vector<16x320xf32> to vector<16x320xbf16>
    %c0_14 = arith.constant 0 : index
    %c0_15 = arith.constant 0 : index
    %24 = vector.load %arg6[%c0_14, %c0_15] : memref<320x128xbf16, #tpu.memory_space<vmem>>, vector<320x128xbf16>
    %cst_16 = arith.constant dense<0.000000e+00> : vector<16x128xf32>
    %25 = tpu.matmul %23, %24, %cst_16 {dimension_numbers = #tpu.dot_dimension_numbers<[1], [0], [0], [1], [0, 0, 1, 1], [], []>} : vector<16x320xbf16>, vector<320x128xbf16>, vector<16x128xf32> -> vector<16x128xf32>
    %c0_17 = arith.constant 0 : index
    %c0_18 = arith.constant 0 : index
    %26 = vector.load %arg7[%c0_17, %c0_18] : memref<1x128xf32, #tpu.memory_space<vmem>>, vector<1x128xf32>
    %27 = vector.broadcast %26 : vector<1x128xf32> to vector<16x128xf32>
    %28 = arith.addf %25, %27 : vector<16x128xf32>
    %cst_19 = arith.constant dense<0xFF800000> : vector<16xf32>
    %29 = vector.multi_reduction <maximumf>, %28, %cst_19 [1] : vector<16x128xf32> to vector<16xf32>
    %30 = vector.shape_cast %29 : vector<16xf32> to vector<16x1xf32>
    %31 = vector.broadcast %30 : vector<16x1xf32> to vector<16x128xf32>
    %32 = arith.subf %28, %31 : vector<16x128xf32>
    %33 = math.exp %32 : vector<16x128xf32>
    %cst_20 = arith.constant dense<0.000000e+00> : vector<16xf32>
    %34 = vector.multi_reduction <add>, %33, %cst_20 [1] : vector<16x128xf32> to vector<16xf32>
    %35 = vector.shape_cast %34 : vector<16xf32> to vector<16x1xf32>
    %36 = vector.broadcast %35 : vector<16x1xf32> to vector<16x128xf32>
    %37 = arith.divf %33, %36 : vector<16x128xf32>
    %38 = arith.truncf %37 : vector<16x128xf32> to vector<16x128xbf16>
    %c0_21 = arith.constant 0 : index
    %c0_22 = arith.constant 0 : index
    %39 = vector.load %arg8[%c0_21, %c0_22] : memref<16x128xbf16, #tpu.memory_space<vmem>>, vector<16x128xbf16>
    tpu.vector_store %arg8[%c0_21, %c0_22], %38 {strides = array<i32>} : memref<16x128xbf16, #tpu.memory_space<vmem>>, vector<16x128xbf16>,
    return
  }
  func.func @transform_0(%arg0: i32) -> (i32, i32) {
    %c0_i32 = arith.constant 0 : i32
    %c0_i32_0 = arith.constant 0 : i32
    return %arg0, %c0_i32 : i32, i32
  }
  func.func @transform_1(%arg0: i32) -> (i32, i32) {
    %c0_i32 = arith.constant 0 : i32
    %c0_i32_0 = arith.constant 0 : i32
    %c0_i32_1 = arith.constant 0 : i32
    return %c0_i32, %c0_i32_0 : i32, i32
  }
  func.func @transform_2(%arg0: i32) -> (i32, i32) {
    %c0_i32 = arith.constant 0 : i32
    %c0_i32_0 = arith.constant 0 : i32
    %c0_i32_1 = arith.constant 0 : i32
    return %c0_i32, %c0_i32_0 : i32, i32
  }
  func.func @transform_3(%arg0: i32) -> (i32, i32) {
    %c0_i32 = arith.constant 0 : i32
    %c0_i32_0 = arith.constant 0 : i32
    %c0_i32_1 = arith.constant 0 : i32
    return %c0_i32, %c0_i32_0 : i32, i32
  }
  func.func @transform_4(%arg0: i32) -> (i32, i32) {
    %c0_i32 = arith.constant 0 : i32
    %c0_i32_0 = arith.constant 0 : i32
    %c0_i32_1 = arith.constant 0 : i32
    return %c0_i32, %c0_i32_0 : i32, i32
  }
  func.func @transform_5(%arg0: i32) -> (i32, i32) {
    %c0_i32 = arith.constant 0 : i32
    %c0_i32_0 = arith.constant 0 : i32
    %c0_i32_1 = arith.constant 0 : i32
    return %c0_i32, %c0_i32_0 : i32, i32
  }
  func.func @transform_6(%arg0: i32) -> (i32, i32) {
    %c0_i32 = arith.constant 0 : i32
    %c0_i32_0 = arith.constant 0 : i32
    %c0_i32_1 = arith.constant 0 : i32
    return %c0_i32, %c0_i32_0 : i32, i32
  }
  func.func @transform_7(%arg0: i32) -> (i32, i32) {
    %c0_i32 = arith.constant 0 : i32
    %c0_i32_0 = arith.constant 0 : i32
    return %arg0, %c0_i32 : i32, i32
  }
}

</mosaic_0001>

<llo_original>
// kernel: tpu_custom_call.1
$region0: #{tpu_custom_call.1}
  #allocation0 [shape = 'u32[]', space=smem, size = 0x4, offset = 0x4, fixed_abs, tag = 'smem constant byte address 0x4 - core index']
  #allocation1 [shape = 'u32[72,128]{1,0:T(1,128)}', space=vmem, size = 0x9000, scoped, tag = 'internal scratch']
  %s0 = inlined_call_operand.hbm [shape: f32[16,320], index: 0, kind: input, shape index: {}]
  %s1 = inlined_call_operand.hbm [shape: bf16[320,320], index: 1, kind: input, shape index: {}]
  %s2 = inlined_call_operand.hbm [shape: f32[1,320], index: 2, kind: input, shape index: {}]
  %s3 = inlined_call_operand.hbm [shape: bf16[320,320], index: 3, kind: input, shape index: {}]
  %s4 = inlined_call_operand.vmem [shape: f32[1,320], index: 4, kind: input, shape index: {}]
  %s5 = inlined_call_operand.hbm [shape: bf16[320,128], index: 5, kind: input, shape index: {}]
  %s6 = inlined_call_operand.vmem [shape: f32[1,128], index: 6, kind: input, shape index: {}]
  %s7 = inlined_call_operand.hbm [shape: bf16[16,128], index: 7, kind: output, shape index: {}]
  %s8 = sld [smem:[#allocation0]]
  $region58: #{tpu_custom_call.1} parent=0
    _
  %s10 = ssub.s32 1, %s8
  %s11 = scalar_select 0, %s10, %s8
  $region1: #{tpu_custom_call.1} parent=0
    #allocation2 [shape = 'u8[24576]{0}', space=vmem, size = 0x6000, scoped, tag = 'input window, operand 0, single buffered']
    #allocation3 [shape = 's32[1]{0}', space=sflag, size = 0x4, scoped, tag = 'scoped memory for tpu_custom_call.1']
    #allocation4 [shape = 's32[1]{0}', space=sflag, size = 0x4, scoped, tag = 'scoped memory for tpu_custom_call.1']
    #allocation5 [shape = 'u8[245760]{0}', space=vmem, size = 0x3c000, scoped, tag = 'input window, operand 1, single buffered']
    #allocation6 [shape = 's32[1]{0}', space=sflag, size = 0x4, scoped, tag = 'scoped memory for tpu_custom_call.1']
    #allocation7 [shape = 'u8[1536]{0}', space=vmem, size = 0x800, scoped, tag = 'input window, operand 2, single buffered']
    #allocation8 [shape = 'u8[245760]{0}', space=vmem, size = 0x3c000, scoped, tag = 'input window, operand 3, single buffered']
    #allocation9 [shape = 's32[1]{0}', space=sflag, size = 0x4, scoped, tag = 'scoped memory for tpu_custom_call.1']
    #allocation10 [shape = 'u8[81920]{0}', space=vmem, size = 0x14000, scoped, tag = 'input window, operand 5, single buffered']
    #allocation11 [shape = 'u8[4096]{0}', space=vmem, size = 0x1000, scoped, tag = 'output window, operand 0, single buffered']
    %12 = vsyncpa [#allocation3], 0
    %13 = vsyncpa [#allocation6], 0
    %14 = vsyncpa [#allocation9], 0
    %15 = vsyncpa [#allocation4], 0
    // Predicated region
    $region2: #{tpu_custom_call.1} parent=1 // pred_check
      _
    $region3: #{tpu_custom_call.1} parent=1 // pred_check_branch
      %17 = sbr.rel (0) target = $region5
    $region4: #{tpu_custom_call.1} parent=1 // pred_region
      %19 = vsyncadd [#allocation3], 0
      %s20 = sshll.u32 %s0, 4
      %s21 = int_to_ptr.hbm [resolvable:$true] %s20
      %s22 = sshll.u32 [#allocation2], 4
      %s23 = int_to_ptr.vmem [resolvable:$true] %s22
      %28 = dma.hbm_to_vmem [thread:$0]  %s21, 768, %s23, [#allocation3], 384, 384, 24
    $region5: #{tpu_custom_call.1} parent=1 // pred_fallthru
      _
    // Predicated region
    $region6: #{tpu_custom_call.1} parent=1 // pred_check
      _
    $region7: #{tpu_custom_call.1} parent=1 // pred_check_branch
      %30 = sbr.rel (0) target = $region9
    $region8: #{tpu_custom_call.1} parent=1 // pred_region
      %32 = vsyncadd [#allocation6], 0
      %s33 = sshll.u32 %s1, 4
      %s34 = int_to_ptr.hbm [resolvable:$true] %s33
      %s35 = sshll.u32 [#allocation5], 4
      %s36 = int_to_ptr.vmem [resolvable:$true] %s35
      %41 = dma.hbm_to_vmem [thread:$0]  %s34, 7680, %s36, [#allocation6], 192, 192, 12
    $region9: #{tpu_custom_call.1} parent=1 // pred_fallthru
      _
    // Predicated region
    $region10: #{tpu_custom_call.1} parent=1 // pred_check
      _
    $region11: #{tpu_custom_call.1} parent=1 // pred_check_branch
      %43 = sbr.rel (0) target = $region13
    $region12: #{tpu_custom_call.1} parent=1 // pred_region
      %45 = vsyncadd [#allocation6], 0
      %s47 = sshll.u32 %s2, 4
      %s48 = int_to_ptr.hbm [resolvable:$true] %s47
      %s49 = sshll.u32 [#allocation7], 4
      %s50 = int_to_ptr.vmem [resolvable:$true] %s49
      %52 = dma.hbm_to_vmem [thread:$0]  %s48, 48, %s50, [#allocation6]
    $region13: #{tpu_custom_call.1} parent=1 // pred_fallthru
      _
    // Predicated region
    $region14: #{tpu_custom_call.1} parent=1 // pred_check
      _
    $region15: #{tpu_custom_call.1} parent=1 // pred_check_branch
      %54 = sbr.rel (0) target = $region17
    $region16: #{tpu_custom_call.1} parent=1 // pred_region
      %56 = vsyncadd [#allocation9], 0
      %s57 = sshll.u32 %s3, 4
      %s58 = int_to_ptr.hbm [resolvable:$true] %s57
      %s59 = sshll.u32 [#allocation8], 4
      %s60 = int_to_ptr.vmem [resolvable:$true] %s59
      %65 = dma.hbm_to_vmem [thread:$0]  %s58, 7680, %s60, [#allocation9], 192, 192, 12
    $region17: #{tpu_custom_call.1} parent=1 // pred_fallthru
      _
    // Predicated region
    $region18: #{tpu_custom_call.1} parent=1 // pred_check
      _
    $region19: #{tpu_custom_call.1} parent=1 // pred_check_branch
      %67 = sbr.rel (0) target = $region21
    $region20: #{tpu_custom_call.1} parent=1 // pred_region
      _
    $region21: #{tpu_custom_call.1} parent=1 // pred_fallthru
      _
    // Predicated region
    $region22: #{tpu_custom_call.1} parent=1 // pred_check
      _
    $region23: #{tpu_custom_call.1} parent=1 // pred_check_branch
      %69 = sbr.rel (0) target = $region25
    $region24: #{tpu_custom_call.1} parent=1 // pred_region
      %71 = vsyncadd [#allocation9], 0
      %s72 = sshll.u32 %s5, 4
      %s73 = int_to_ptr.hbm [resolvable:$true] %s72
      %s74 = sshll.u32 [#allocation10], 4
      %s75 = int_to_ptr.vmem [resolvable:$true] %s74
      %80 = dma.hbm_to_vmem [thread:$0]  %s73, 2560, %s75, [#allocation9], 64, 64, 4
    $region25: #{tpu_custom_call.1} parent=1 // pred_fallthru
      _
    // Predicated region
    $region26: #{tpu_custom_call.1} parent=1 // pred_check
      _
    $region27: #{tpu_custom_call.1} parent=1 // pred_check_branch
      %82 = sbr.rel (0) target = $region29
    $region28: #{tpu_custom_call.1} parent=1 // pred_region
      _
    $region29: #{tpu_custom_call.1} parent=1 // pred_fallthru
      _
    // Predicated region
    $region30: #{tpu_custom_call.1} parent=1 // pred_check
      _
    $region31: #{tpu_custom_call.1} parent=1 // pred_check_branch
      %84 = sbr.rel (0) target = $region33
    $region32: #{tpu_custom_call.1} parent=1 // pred_region
      %86 = dma.done [#allocation3], 768
    $region33: #{tpu_custom_call.1} parent=1 // pred_fallthru
      _
    // Predicated region
    $region34: #{tpu_custom_call.1} parent=1 // pred_check
      _
    $region35: #{tpu_custom_call.1} parent=1 // pred_check_branch
      %88 = sbr.rel (0) target = $region37
    $region36: #{tpu_custom_call.1} parent=1 // pred_region
      %90 = dma.done [#allocation6], 7680
    $region37: #{tpu_custom_call.1} parent=1 // pred_fallthru
      _
    // Predicated region
    $region38: #{tpu_custom_call.1} parent=1 // pred_check
      _
    $region39: #{tpu_custom_call.1} parent=1 // pred_check_branch
      %92 = sbr.rel (0) target = $region41
    $region40: #{tpu_custom_call.1} parent=1 // pred_region
      %94 = dma.done [#allocation6], 48
    $region41: #{tpu_custom_call.1} parent=1 // pred_fallthru
      _
    // Predicated region
    $region42: #{tpu_custom_call.1} parent=1 // pred_check
      _
    $region43: #{tpu_custom_call.1} parent=1 // pred_check_branch
      %96 = sbr.rel (0) target = $region45
    $region44: #{tpu_custom_call.1} parent=1 // pred_region
      %98 = dma.done [#allocation9], 7680
    $region45: #{tpu_custom_call.1} parent=1 // pred_fallthru
      _
    // Predicated region
    $region46: #{tpu_custom_call.1} parent=1 // pred_check
      _
    $region47: #{tpu_custom_call.1} parent=1 // pred_check_branch
      %100 = sbr.rel (0) target = $region49
    $region48: #{tpu_custom_call.1} parent=1 // pred_region
      %102 = dma.done [#allocation9], 2560
    $region49: #{tpu_custom_call.1} parent=1 // pred_fallthru
      _
    %v104 = vld [vmem:[#allocation2] sm:$0xff]
    %v105 = vld [vmem:[#allocation2 + $0x8] sm:$0xff]
    %v106 = vld [vmem:[#allocation2 + $0x10] sm:$0xff]
    %v107 = vld [vmem:[#allocation2 + $0x18] sm:$0xff]
    %v108 = vld [vmem:[#allocation2 + $0x20] sm:$0xff]
    %v109 = vld [vmem:[#allocation2 + $0x28] sm:$0xff]
    %v110 = vpack.c.bf16 %v107, %v104
    %v111 = vpack.c.bf16 %v108, %v105
    %v112 = vpack.c.bf16 %v109, %v106
    %v113 = vld [vmem:[#allocation5] sm:$0xff]
    %v114 = vld [vmem:[#allocation5 + $0x8] sm:$0xf]
    %v115 = vld [vmem:[#allocation5 + $0xc] sm:$0xff]
    %v116 = vld [vmem:[#allocation5 + $0x14] sm:$0xf]
    %v117 = vld [vmem:[#allocation5 + $0x18] sm:$0xff]
    %v118 = vld [vmem:[#allocation5 + $0x20] sm:$0xf]
    %v119 = vld [vmem:[#allocation5 + $0x24] sm:$0xff]
    %v120 = vld [vmem:[#allocation5 + $0x2c] sm:$0xf]
    %v121 = vld [vmem:[#allocation5 + $0x30] sm:$0xff]
    %v122 = vld [vmem:[#allocation5 + $0x38] sm:$0xf]
    %v123 = vld [vmem:[#allocation5 + $0x3c] sm:$0xff]
    %v124 = vld [vmem:[#allocation5 + $0x44] sm:$0xf]
    %v125 = vld [vmem:[#allocation5 + $0x48] sm:$0xff]
    %v126 = vld [vmem:[#allocation5 + $0x50] sm:$0xf]
    %v127 = vld [vmem:[#allocation5 + $0x54] sm:$0xff]
    %v128 = vld [vmem:[#allocation5 + $0x5c] sm:$0xf]
    %v129 = vld [vmem:[#allocation5 + $0x60] sm:$0xff]
    %v130 = vld [vmem:[#allocation5 + $0x68] sm:$0xf]
    %v131 = vld [vmem:[#allocation5 + $0x6c] sm:$0xff]
    %v132 = vld [vmem:[#allocation5 + $0x74] sm:$0xf]
    %v133 = vld [vmem:[#allocation5 + $0x78] sm:$0xff]
    %v134 = vld [vmem:[#allocation5 + $0x80] sm:$0xf]
    %v135 = vld [vmem:[#allocation5 + $0x84] sm:$0xff]
    %v136 = vld [vmem:[#allocation5 + $0x8c] sm:$0xf]
    %v137 = vld [vmem:[#allocation5 + $0x90] sm:$0xff]
    %v138 = vld [vmem:[#allocation5 + $0x98] sm:$0xf]
    %v139 = vld [vmem:[#allocation5 + $0x9c] sm:$0xff]
    %v140 = vld [vmem:[#allocation5 + $0xa4] sm:$0xf]
    %v141 = vld [vmem:[#allocation5 + $0xa8] sm:$0xff]
    %v142 = vld [vmem:[#allocation5 + $0xb0] sm:$0xf]
    %v143 = vld [vmem:[#allocation5 + $0xb4] sm:$0xff]
    %v144 = vld [vmem:[#allocation5 + $0xbc] sm:$0xf]
    %v145 = vld [vmem:[#allocation5 + $0xc0] sm:$0xff]
    %v146 = vld [vmem:[#allocation5 + $0xc8] sm:$0xf]
    %v147 = vld [vmem:[#allocation5 + $0xcc] sm:$0xff]
    %v148 = vld [vmem:[#allocation5 + $0xd4] sm:$0xf]
    %v149 = vld [vmem:[#allocation5 + $0xd8] sm:$0xff]
    %v150 = vld [vmem:[#allocation5 + $0xe0] sm:$0xf]
    %v151 = vld [vmem:[#allocation5 + $0xe4] sm:$0xff]
    %v152 = vld [vmem:[#allocation5 + $0xec] sm:$0xf]
    %v153 = vld [vmem:[#allocation5 + $0xf0] sm:$0xff]
    %v154 = vld [vmem:[#allocation5 + $0xf8] sm:$0xf]
    %v155 = vld [vmem:[#allocation5 + $0xfc] sm:$0xff]
    %v156 = vld [vmem:[#allocation5 + $0x104] sm:$0xf]
    %v157 = vld [vmem:[#allocation5 + $0x108] sm:$0xff]
    %v158 = vld [vmem:[#allocation5 + $0x110] sm:$0xf]
    %v159 = vld [vmem:[#allocation5 + $0x114] sm:$0xff]
    %v160 = vld [vmem:[#allocation5 + $0x11c] sm:$0xf]
    %v161 = vld [vmem:[#allocation5 + $0x120] sm:$0xff]
    %v162 = vld [vmem:[#allocation5 + $0x128] sm:$0xf]
    %v163 = vld [vmem:[#allocation5 + $0x12c] sm:$0xff]
    %v164 = vld [vmem:[#allocation5 + $0x134] sm:$0xf]
    %v165 = vld [vmem:[#allocation5 + $0x138] sm:$0xff]
    %v166 = vld [vmem:[#allocation5 + $0x140] sm:$0xf]
    %v167 = vld [vmem:[#allocation5 + $0x144] sm:$0xff]
    %v168 = vld [vmem:[#allocation5 + $0x14c] sm:$0xf]
    %v169 = vld [vmem:[#allocation5 + $0x150] sm:$0xff]
    %v170 = vld [vmem:[#allocation5 + $0x158] sm:$0xf]
    %v171 = vld [vmem:[#allocation5 + $0x15c] sm:$0xff]
    %v172 = vld [vmem:[#allocation5 + $0x164] sm:$0xf]
    %v173 = vld [vmem:[#allocation5 + $0x168] sm:$0xff]
    %v174 = vld [vmem:[#allocation5 + $0x170] sm:$0xf]
    %v175 = vld [vmem:[#allocation5 + $0x174] sm:$0xff]
    %v176 = vld [vmem:[#allocation5 + $0x17c] sm:$0xf]
    %v177 = vld [vmem:[#allocation5 + $0x180] sm:$0xff]
    %v178 = vld [vmem:[#allocation5 + $0x188] sm:$0xf]
    %v179 = vld [vmem:[#allocation5 + $0x18c] sm:$0xff]
    %v180 = vld [vmem:[#allocation5 + $0x194] sm:$0xf]
    %v181 = vld [vmem:[#allocation5 + $0x198] sm:$0xff]
    %v182 = vld [vmem:[#allocation5 + $0x1a0] sm:$0xf]
    %v183 = vld [vmem:[#allocation5 + $0x1a4] sm:$0xff]
    %v184 = vld [vmem:[#allocation5 + $0x1ac] sm:$0xf]
    %v185 = vld [vmem:[#allocation5 + $0x1b0] sm:$0xff]
    %v186 = vld [vmem:[#allocation5 + $0x1b8] sm:$0xf]
    %v187 = vld [vmem:[#allocation5 + $0x1bc] sm:$0xff]
    %v188 = vld [vmem:[#allocation5 + $0x1c4] sm:$0xf]
    %v189 = vld [vmem:[#allocation5 + $0x1c8] sm:$0xff]
    %v190 = vld [vmem:[#allocation5 + $0x1d0] sm:$0xf]
    %v191 = vld [vmem:[#allocation5 + $0x1d4] sm:$0xff]
    %v192 = vld [vmem:[#allocation5 + $0x1dc] sm:$0xf]
    %v193 = vld [vmem:[#allocation7] sm:$0x7]
    %v195 = vperm.slane %v193, 0
    %v196 = vperm.slane %v193, 1
    %v197 = vperm.slane %v193, 2
    %v281 = vunpack.c.l.b16 %v113
    %v282 = vunpack.c.h.b16 %v113
    %v283 = vunpack.c.l.b16 %v114
    %v284 = vunpack.c.l.b16 %v115
    %v285 = vunpack.c.h.b16 %v115
    %v286 = vunpack.c.l.b16 %v116
    %v287 = vunpack.c.l.b16 %v117
    %v288 = vunpack.c.h.b16 %v117
    %v289 = vunpack.c.l.b16 %v118
    %v290 = vunpack.c.l.b16 %v119
    %v291 = vunpack.c.h.b16 %v119
    %v292 = vunpack.c.l.b16 %v120
    %v293 = vunpack.c.l.b16 %v121
    %v294 = vunpack.c.h.b16 %v121
    %v295 = vunpack.c.l.b16 %v122
    %v296 = vunpack.c.l.b16 %v123
    %v297 = vunpack.c.h.b16 %v123
    %v298 = vunpack.c.l.b16 %v124
    %v299 = vunpack.c.l.b16 %v125
    %v300 = vunpack.c.h.b16 %v125
    %v301 = vunpack.c.l.b16 %v126
    %v302 = vunpack.c.l.b16 %v127
    %v303 = vunpack.c.h.b16 %v127
    %v304 = vunpack.c.l.b16 %v128
    %v305 = vunpack.c.l.b16 %v129
    %v306 = vunpack.c.h.b16 %v129
    %v307 = vunpack.c.l.b16 %v130
    %v308 = vunpack.c.l.b16 %v131
    %v309 = vunpack.c.h.b16 %v131
    %v310 = vunpack.c.l.b16 %v132
    %v311 = vunpack.c.l.b16 %v133
    %v312 = vunpack.c.h.b16 %v133
    %v313 = vunpack.c.l.b16 %v134
    %v314 = vunpack.c.l.b16 %v135
    %v315 = vunpack.c.h.b16 %v135
    %v316 = vunpack.c.l.b16 %v136
    %v317 = vunpack.c.l.b16 %v137
    %v318 = vunpack.c.h.b16 %v137
    %v319 = vunpack.c.l.b16 %v138
    %v320 = vunpack.c.l.b16 %v139
    %v321 = vunpack.c.h.b16 %v139
    %v322 = vunpack.c.l.b16 %v140
    %v323 = vunpack.c.l.b16 %v141
    %v324 = vunpack.c.h.b16 %v141
    %v325 = vunpack.c.l.b16 %v142
    %v326 = vunpack.c.l.b16 %v143
    %v327 = vunpack.c.h.b16 %v143
    %v328 = vunpack.c.l.b16 %v144
    %v329 = vunpack.c.l.b16 %v145
    %v330 = vunpack.c.h.b16 %v145
    %v331 = vunpack.c.l.b16 %v146
    %v332 = vunpack.c.l.b16 %v147
    %v333 = vunpack.c.h.b16 %v147
    %v334 = vunpack.c.l.b16 %v148
    %v335 = vunpack.c.l.b16 %v149
    %v336 = vunpack.c.h.b16 %v149
    %v337 = vunpack.c.l.b16 %v150
    %v338 = vunpack.c.l.b16 %v151
    %v339 = vunpack.c.h.b16 %v151
    %v340 = vunpack.c.l.b16 %v152
    %v341 = vunpack.c.l.b16 %v153
    %v342 = vunpack.c.h.b16 %v153
    %v343 = vunpack.c.l.b16 %v154
    %v344 = vunpack.c.l.b16 %v155
    %v345 = vunpack.c.h.b16 %v155
    %v346 = vunpack.c.l.b16 %v156
    %v347 = vunpack.c.l.b16 %v157
    %v348 = vunpack.c.h.b16 %v157
    %v349 = vunpack.c.l.b16 %v158
    %v350 = vunpack.c.l.b16 %v159
    %v351 = vunpack.c.h.b16 %v159
    %v352 = vunpack.c.l.b16 %v160
    %v353 = vunpack.c.l.b16 %v161
    %v354 = vunpack.c.h.b16 %v161
    %v355 = vunpack.c.l.b16 %v162
    %v356 = vunpack.c.l.b16 %v163
    %v357 = vunpack.c.h.b16 %v163
    %v358 = vunpack.c.l.b16 %v164
    %v359 = vunpack.c.l.b16 %v165
    %v360 = vunpack.c.h.b16 %v165
    %v361 = vunpack.c.l.b16 %v166
    %v362 = vunpack.c.l.b16 %v167
    %v363 = vunpack.c.h.b16 %v167
    %v364 = vunpack.c.l.b16 %v168
    %v365 = vunpack.c.l.b16 %v169
    %v366 = vunpack.c.h.b16 %v169
    %v367 = vunpack.c.l.b16 %v170
    %v368 = vunpack.c.l.b16 %v171
    %v369 = vunpack.c.h.b16 %v171
    %v370 = vunpack.c.l.b16 %v172
    %v371 = vunpack.c.l.b16 %v173
    %v372 = vunpack.c.h.b16 %v173
    %v373 = vunpack.c.l.b16 %v174
    %v374 = vunpack.c.l.b16 %v175
    %v375 = vunpack.c.h.b16 %v175
    %v376 = vunpack.c.l.b16 %v176
    %v377 = vunpack.c.l.b16 %v177
    %v378 = vunpack.c.h.b16 %v177
    %v379 = vunpack.c.l.b16 %v178
    %v380 = vunpack.c.l.b16 %v179
    %v381 = vunpack.c.h.b16 %v179
    %v382 = vunpack.c.l.b16 %v180
    %v383 = vunpack.c.l.b16 %v181
    %v384 = vunpack.c.h.b16 %v181
    %v385 = vunpack.c.l.b16 %v182
    %v386 = vunpack.c.l.b16 %v183
    %v387 = vunpack.c.h.b16 %v183
    %v388 = vunpack.c.l.b16 %v184
    %v389 = vunpack.c.l.b16 %v185
    %v390 = vunpack.c.h.b16 %v185
    %v391 = vunpack.c.l.b16 %v186
    %v392 = vunpack.c.l.b16 %v187
    %v393 = vunpack.c.h.b16 %v187
    %v394 = vunpack.c.l.b16 %v188
    %v395 = vunpack.c.l.b16 %v189
    %v396 = vunpack.c.h.b16 %v189
    %v397 = vunpack.c.l.b16 %v190
    %v398 = vunpack.c.l.b16 %v191
    %v399 = vunpack.c.h.b16 %v191
    %v400 = vunpack.c.l.b16 %v192
    %v401 = vpack.c.b16 %v284, %v281
    %v402 = vpack.c.b16 %v285, %v282
    %v403 = vpack.c.b16 %v286, %v283
    %v404 = vpack.c.b16 %v290, %v287
    %v405 = vpack.c.b16 %v291, %v288
    %v406 = vpack.c.b16 %v292, %v289
    %v407 = vpack.c.b16 %v296, %v293
    %v408 = vpack.c.b16 %v297, %v294
    %v409 = vpack.c.b16 %v298, %v295
    %v410 = vpack.c.b16 %v302, %v299
    %v411 = vpack.c.b16 %v303, %v300
    %v412 = vpack.c.b16 %v304, %v301
    %v413 = vpack.c.b16 %v308, %v305
    %v414 = vpack.c.b16 %v309, %v306
    %v415 = vpack.c.b16 %v310, %v307
    %v416 = vpack.c.b16 %v314, %v311
    %v417 = vpack.c.b16 %v315, %v312
    %v418 = vpack.c.b16 %v316, %v313
    %v419 = vpack.c.b16 %v320, %v317
    %v420 = vpack.c.b16 %v321, %v318
    %v421 = vpack.c.b16 %v322, %v319
    %v422 = vpack.c.b16 %v326, %v323
    %v423 = vpack.c.b16 %v327, %v324
    %v424 = vpack.c.b16 %v328, %v325
    %v425 = vpack.c.b16 %v332, %v329
    %v426 = vpack.c.b16 %v333, %v330
    %v427 = vpack.c.b16 %v334, %v331
    %v428 = vpack.c.b16 %v338, %v335
    %v429 = vpack.c.b16 %v339, %v336
    %v430 = vpack.c.b16 %v340, %v337
    %v431 = vpack.c.b16 %v344, %v341
    %v432 = vpack.c.b16 %v345, %v342
    %v433 = vpack.c.b16 %v346, %v343
    %v434 = vpack.c.b16 %v350, %v347
    %v435 = vpack.c.b16 %v351, %v348
    %v436 = vpack.c.b16 %v352, %v349
    %v437 = vpack.c.b16 %v356, %v353
    %v438 = vpack.c.b16 %v357, %v354
    %v439 = vpack.c.b16 %v358, %v355
    %v440 = vpack.c.b16 %v362, %v359
    %v441 = vpack.c.b16 %v363, %v360
    %v442 = vpack.c.b16 %v364, %v361
    %v443 = vpack.c.b16 %v368, %v365
    %v444 = vpack.c.b16 %v369, %v366
    %v445 = vpack.c.b16 %v370, %v367
    %v446 = vpack.c.b16 %v374, %v371
    %v447 = vpack.c.b16 %v375, %v372
    %v448 = vpack.c.b16 %v376, %v373
    %v449 = vpack.c.b16 %v380, %v377
    %v450 = vpack.c.b16 %v381, %v378
    %v451 = vpack.c.b16 %v382, %v379
    %v452 = vpack.c.b16 %v386, %v383
    %v453 = vpack.c.b16 %v387, %v384
    %v454 = vpack.c.b16 %v388, %v385
    %v455 = vpack.c.b16 %v392, %v389
    %v456 = vpack.c.b16 %v393, %v390
    %v457 = vpack.c.b16 %v394, %v391
    %v458 = vpack.c.b16 %v398, %v395
    %v459 = vpack.c.b16 %v399, %v396
    %v460 = vpack.c.b16 %v400, %v397
    %vm521 = vcmask 523264
    %v523 = vsel %vm521, %v112, 0
    %525 = vmatpush.bf16.msra.mxu0 %v422
    %526 = vmatpush.bf16.msra.mxu0 %v419
    %527 = vmatpush.bf16.msra.mxu0 %v416
    %528 = vmatpush.bf16.msra.mxu0 %v413
    %529 = vmatpush.bf16.msra.mxu0 %v410
    %530 = vmatpush.bf16.msra.mxu0 %v407
    %531 = vmatpush.bf16.msra.mxu0 %v404
    %532 = vmatpush.bf16.msra.mxu0 %v401
    %533 = vmatmul.bf16.gmra.mxu0 %v110
    %v534 = vpop.f32.mrf.mxu0
    %v535 = vadd.f32 %v195, %v534
    %v536 = vpop.f32.mrf.mxu0
    %v537 = vadd.f32 %v195, %v536
    %538 = vdwg.mxu0
    %539 = vmatpush.bf16.msra.mxu0 %v446
    %540 = vmatpush.bf16.msra.mxu0 %v443
    %541 = vmatpush.bf16.msra.mxu0 %v440
    %542 = vmatpush.bf16.msra.mxu0 %v437
    %543 = vmatpush.bf16.msra.mxu0 %v434
    %544 = vmatpush.bf16.msra.mxu0 %v431
    %545 = vmatpush.bf16.msra.mxu0 %v428
    %546 = vmatpush.bf16.msra.mxu0 %v425
    %547 = vmatmul.bf16.gmra.mxu0 %v111
    %v548 = vpop.f32.mrf.mxu0
    %v549 = vadd.f32 %v535, %v548
    %v550 = vpop.f32.mrf.mxu0
    %v551 = vadd.f32 %v537, %v550
    %552 = vdwg.mxu0
    %553 = vmatpush.bf16.msra.mxu0 0
    %554 = vmatpush.bf16.msra.mxu0 0
    %555 = vmatpush.bf16.msra.mxu0 0
    %556 = vmatpush.bf16.msra.mxu0 0
    %557 = vmatpush.bf16.msra.mxu0 %v458
    %558 = vmatpush.bf16.msra.mxu0 %v455
    %559 = vmatpush.bf16.msra.mxu0 %v452
    %560 = vmatpush.bf16.msra.mxu0 %v449
    %561 = vmatmul.bf16.gmra.mxu0 %v523
    %v562 = vpop.f32.mrf.mxu0
    %v563 = vadd.f32 %v549, %v562
    %v564 = vpop.f32.mrf.mxu0
    %v565 = vadd.f32 %v551, %v564
    %566 = vdwg.mxu0
    %567 = vmatpush.bf16.msra.mxu0 %v423
    %568 = vmatpush.bf16.msra.mxu0 %v420
    %569 = vmatpush.bf16.msra.mxu0 %v417
    %570 = vmatpush.bf16.msra.mxu0 %v414
    %571 = vmatpush.bf16.msra.mxu0 %v411
    %572 = vmatpush.bf16.msra.mxu0 %v408
    %573 = vmatpush.bf16.msra.mxu0 %v405
    %574 = vmatpush.bf16.msra.mxu0 %v402
    %575 = vmatmul.bf16.gmra.mxu0 %v110
    %v576 = vpop.f32.mrf.mxu0
    %v577 = vadd.f32 %v196, %v576
    %v578 = vpop.f32.mrf.mxu0
    %v579 = vadd.f32 %v196, %v578
    %580 = vdwg.mxu0
    %581 = vmatpush.bf16.msra.mxu0 %v447
    %582 = vmatpush.bf16.msra.mxu0 %v444
    %583 = vmatpush.bf16.msra.mxu0 %v441
    %584 = vmatpush.bf16.msra.mxu0 %v438
    %585 = vmatpush.bf16.msra.mxu0 %v435
    %586 = vmatpush.bf16.msra.mxu0 %v432
    %587 = vmatpush.bf16.msra.mxu0 %v429
    %588 = vmatpush.bf16.msra.mxu0 %v426
    %589 = vmatmul.bf16.gmra.mxu0 %v111
    %v590 = vpop.f32.mrf.mxu0
    %v591 = vadd.f32 %v577, %v590
    %v592 = vpop.f32.mrf.mxu0
    %v593 = vadd.f32 %v579, %v592
    %594 = vdwg.mxu0
    %595 = vmatpush.bf16.msra.mxu0 0
    %596 = vmatpush.bf16.msra.mxu0 0
    %597 = vmatpush.bf16.msra.mxu0 0
    %598 = vmatpush.bf16.msra.mxu0 0
    %599 = vmatpush.bf16.msra.mxu0 %v459
    %600 = vmatpush.bf16.msra.mxu0 %v456
    %601 = vmatpush.bf16.msra.mxu0 %v453
    %602 = vmatpush.bf16.msra.mxu0 %v450
    %603 = vmatmul.bf16.gmra.mxu0 %v523
    %v604 = vpop.f32.mrf.mxu0
    %v605 = vadd.f32 %v591, %v604
    %v606 = vpop.f32.mrf.mxu0
    %v607 = vadd.f32 %v593, %v606
    %608 = vdwg.mxu0
    %609 = vmatpush.bf16.msra.mxu0 %v424
    %610 = vmatpush.bf16.msra.mxu0 %v421
    %611 = vmatpush.bf16.msra.mxu0 %v418
    %612 = vmatpush.bf16.msra.mxu0 %v415
    %613 = vmatpush.bf16.msra.mxu0 %v412
    %614 = vmatpush.bf16.msra.mxu0 %v409
    %615 = vmatpush.bf16.msra.mxu0 %v406
    %616 = vmatpush.bf16.msra.mxu0 %v403
    %617 = vmatmul.bf16.gmra.mxu0 %v110
    %v618 = vpop.f32.mrf.mxu0
    %v619 = vadd.f32 %v197, %v618
    %v620 = vpop.f32.mrf.mxu0
    %v621 = vadd.f32 %v197, %v620
    %622 = vdwg.mxu0
    %623 = vmatpush.bf16.msra.mxu0 %v448
    %624 = vmatpush.bf16.msra.mxu0 %v445
    %625 = vmatpush.bf16.msra.mxu0 %v442
    %626 = vmatpush.bf16.msra.mxu0 %v439
    %627 = vmatpush.bf16.msra.mxu0 %v436
    %628 = vmatpush.bf16.msra.mxu0 %v433
    %629 = vmatpush.bf16.msra.mxu0 %v430
    %630 = vmatpush.bf16.msra.mxu0 %v427
    %631 = vmatmul.bf16.gmra.mxu0 %v111
    %v632 = vpop.f32.mrf.mxu0
    %v633 = vadd.f32 %v619, %v632
    %v634 = vpop.f32.mrf.mxu0
    %v635 = vadd.f32 %v621, %v634
    %636 = vdwg.mxu0
    %637 = vmatpush.bf16.msra.mxu0 0
    %638 = vmatpush.bf16.msra.mxu0 0
    %639 = vmatpush.bf16.msra.mxu0 0
    %640 = vmatpush.bf16.msra.mxu0 0
    %641 = vmatpush.bf16.msra.mxu0 %v460
    %642 = vmatpush.bf16.msra.mxu0 %v457
    %643 = vmatpush.bf16.msra.mxu0 %v454
    %644 = vmatpush.bf16.msra.mxu0 %v451
    %645 = vmatmul.bf16.gmra.mxu0 %v523
    %v646 = vpop.f32.mrf.mxu0
    %v647 = vadd.f32 %v633, %v646
    %v648 = vpop.f32.mrf.mxu0
    %v649 = vadd.f32 %v635, %v648
    %650 = vdwg.mxu0
    %vm651 = vcmp.gt.f32.partialorder %v563, 0.0
    %vm652 = vcmp.gt.f32.partialorder %v605, 0.0
    %vm653 = vcmp.gt.f32.partialorder %v647, 0.0
    %vm654 = vcmp.gt.f32.partialorder %v565, 0.0
    %vm655 = vcmp.gt.f32.partialorder %v607, 0.0
    %vm656 = vcmp.gt.f32.partialorder %v649, 0.0
    %v657 = vmul.f32 %v563, 0.01
    %v658 = vmul.f32 %v605, 0.01
    %v659 = vmul.f32 %v647, 0.01
    %v660 = vmul.f32 %v565, 0.01
    %v661 = vmul.f32 %v607, 0.01
    %v662 = vmul.f32 %v649, 0.01
    %v663 = vsel %vm651, %v563, %v657
    %v664 = vsel %vm652, %v605, %v658
    %v665 = vsel %vm653, %v647, %v659
    %v666 = vsel %vm654, %v565, %v660
    %v667 = vsel %vm655, %v607, %v661
    %v668 = vsel %vm656, %v649, %v662
    %v669 = vpack.c.bf16 %v666, %v663
    %v670 = vpack.c.bf16 %v667, %v664
    %v671 = vpack.c.bf16 %v668, %v665
    %v672 = vld [vmem:[#allocation8] sm:$0xff]
    %v673 = vld [vmem:[#allocation8 + $0x8] sm:$0xf]
    %v674 = vld [vmem:[#allocation8 + $0xc] sm:$0xff]
    %v675 = vld [vmem:[#allocation8 + $0x14] sm:$0xf]
    %v676 = vld [vmem:[#allocation8 + $0x18] sm:$0xff]
    %v677 = vld [vmem:[#allocation8 + $0x20] sm:$0xf]
    %v678 = vld [vmem:[#allocation8 + $0x24] sm:$0xff]
    %v679 = vld [vmem:[#allocation8 + $0x2c] sm:$0xf]
    %v680 = vld [vmem:[#allocation8 + $0x30] sm:$0xff]
    %v681 = vld [vmem:[#allocation8 + $0x38] sm:$0xf]
    %v682 = vld [vmem:[#allocation8 + $0x3c] sm:$0xff]
    %v683 = vld [vmem:[#allocation8 + $0x44] sm:$0xf]
    %v684 = vld [vmem:[#allocation8 + $0x48] sm:$0xff]
    %v685 = vld [vmem:[#allocation8 + $0x50] sm:$0xf]
    %v686 = vld [vmem:[#allocation8 + $0x54] sm:$0xff]
    %v687 = vld [vmem:[#allocation8 + $0x5c] sm:$0xf]
    %v688 = vld [vmem:[#allocation8 + $0x60] sm:$0xff]
    %v689 = vld [vmem:[#allocation8 + $0x68] sm:$0xf]
    %v690 = vld [vmem:[#allocation8 + $0x6c] sm:$0xff]
    %v691 = vld [vmem:[#allocation8 + $0x74] sm:$0xf]
    %v692 = vld [vmem:[#allocation8 + $0x78] sm:$0xff]
    %v693 = vld [vmem:[#allocation8 + $0x80] sm:$0xf]
    %v694 = vld [vmem:[#allocation8 + $0x84] sm:$0xff]
    %v695 = vld [vmem:[#allocation8 + $0x8c] sm:$0xf]
    %v696 = vld [vmem:[#allocation8 + $0x90] sm:$0xff]
    %v697 = vld [vmem:[#allocation8 + $0x98] sm:$0xf]
    %v698 = vld [vmem:[#allocation8 + $0x9c] sm:$0xff]
    %v699 = vld [vmem:[#allocation8 + $0xa4] sm:$0xf]
    %v700 = vld [vmem:[#allocation8 + $0xa8] sm:$0xff]
    %v701 = vld [vmem:[#allocation8 + $0xb0] sm:$0xf]
    %v702 = vld [vmem:[#allocation8 + $0xb4] sm:$0xff]
    %v703 = vld [vmem:[#allocation8 + $0xbc] sm:$0xf]
    %v704 = vld [vmem:[#allocation8 + $0xc0] sm:$0xff]
    %v705 = vld [vmem:[#allocation8 + $0xc8] sm:$0xf]
    %v706 = vld [vmem:[#allocation8 + $0xcc] sm:$0xff]
    %v707 = vld [vmem:[#allocation8 + $0xd4] sm:$0xf]
    %v708 = vld [vmem:[#allocation8 + $0xd8] sm:$0xff]
    %v709 = vld [vmem:[#allocation8 + $0xe0] sm:$0xf]
    %v710 = vld [vmem:[#allocation8 + $0xe4] sm:$0xff]
    %v711 = vld [vmem:[#allocation8 + $0xec] sm:$0xf]
    %v712 = vld [vmem:[#allocation8 + $0xf0] sm:$0xff]
    %v713 = vld [vmem:[#allocation8 + $0xf8] sm:$0xf]
    %v714 = vld [vmem:[#allocation8 + $0xfc] sm:$0xff]
    %v715 = vld [vmem:[#allocation8 + $0x104] sm:$0xf]
    %v716 = vld [vmem:[#allocation8 + $0x108] sm:$0xff]
    %v717 = vld [vmem:[#allocation8 + $0x110] sm:$0xf]
    %v718 = vld [vmem:[#allocation8 + $0x114] sm:$0xff]
    %v719 = vld [vmem:[#allocation8 + $0x11c] sm:$0xf]
    %v720 = vld [vmem:[#allocation8 + $0x120] sm:$0xff]
    %v721 = vld [vmem:[#allocation8 + $0x128] sm:$0xf]
    %v722 = vld [vmem:[#allocation8 + $0x12c] sm:$0xff]
    %v723 = vld [vmem:[#allocation8 + $0x134] sm:$0xf]
    %v724 = vld [vmem:[#allocation8 + $0x138] sm:$0xff]
    %v725 = vld [vmem:[#allocation8 + $0x140] sm:$0xf]
    %v726 = vld [vmem:[#allocation8 + $0x144] sm:$0xff]
    %v727 = vld [vmem:[#allocation8 + $0x14c] sm:$0xf]
    %v728 = vld [vmem:[#allocation8 + $0x150] sm:$0xff]
    %v729 = vld [vmem:[#allocation8 + $0x158] sm:$0xf]
    %v730 = vld [vmem:[#allocation8 + $0x15c] sm:$0xff]
    %v731 = vld [vmem:[#allocation8 + $0x164] sm:$0xf]
    %v732 = vld [vmem:[#allocation8 + $0x168] sm:$0xff]
    %v733 = vld [vmem:[#allocation8 + $0x170] sm:$0xf]
    %v734 = vld [vmem:[#allocation8 + $0x174] sm:$0xff]
    %v735 = vld [vmem:[#allocation8 + $0x17c] sm:$0xf]
    %v736 = vld [vmem:[#allocation8 + $0x180] sm:$0xff]
    %v737 = vld [vmem:[#allocation8 + $0x188] sm:$0xf]
    %v738 = vld [vmem:[#allocation8 + $0x18c] sm:$0xff]
    %v739 = vld [vmem:[#allocation8 + $0x194] sm:$0xf]
    %v740 = vld [vmem:[#allocation8 + $0x198] sm:$0xff]
    %v741 = vld [vmem:[#allocation8 + $0x1a0] sm:$0xf]
    %v742 = vld [vmem:[#allocation8 + $0x1a4] sm:$0xff]
    %v743 = vld [vmem:[#allocation8 + $0x1ac] sm:$0xf]
    %v744 = vld [vmem:[#allocation8 + $0x1b0] sm:$0xff]
    %v745 = vld [vmem:[#allocation8 + $0x1b8] sm:$0xf]
    %v746 = vld [vmem:[#allocation8 + $0x1bc] sm:$0xff]
    %v747 = vld [vmem:[#allocation8 + $0x1c4] sm:$0xf]
    %v748 = vld [vmem:[#allocation8 + $0x1c8] sm:$0xff]
    %v749 = vld [vmem:[#allocation8 + $0x1d0] sm:$0xf]
    %v750 = vld [vmem:[#allocation8 + $0x1d4] sm:$0xff]
    %v751 = vld [vmem:[#allocation8 + $0x1dc] sm:$0xf]
    %v752 = vld [vmem:[%s4] sm:$0x7]
    %v754 = vperm.slane %v752, 0
    %v755 = vperm.slane %v752, 1
    %v756 = vperm.slane %v752, 2
    %v840 = vunpack.c.l.b16 %v672
    %v841 = vunpack.c.h.b16 %v672
    %v842 = vunpack.c.l.b16 %v673
    %v843 = vunpack.c.l.b16 %v674
    %v844 = vunpack.c.h.b16 %v674
    %v845 = vunpack.c.l.b16 %v675
    %v846 = vunpack.c.l.b16 %v676
    %v847 = vunpack.c.h.b16 %v676
    %v848 = vunpack.c.l.b16 %v677
    %v849 = vunpack.c.l.b16 %v678
    %v850 = vunpack.c.h.b16 %v678
    %v851 = vunpack.c.l.b16 %v679
    %v852 = vunpack.c.l.b16 %v680
    %v853 = vunpack.c.h.b16 %v680
    %v854 = vunpack.c.l.b16 %v681
    %v855 = vunpack.c.l.b16 %v682
    %v856 = vunpack.c.h.b16 %v682
    %v857 = vunpack.c.l.b16 %v683
    %v858 = vunpack.c.l.b16 %v684
    %v859 = vunpack.c.h.b16 %v684
    %v860 = vunpack.c.l.b16 %v685
    %v861 = vunpack.c.l.b16 %v686
    %v862 = vunpack.c.h.b16 %v686
    %v863 = vunpack.c.l.b16 %v687
    %v864 = vunpack.c.l.b16 %v688
    %v865 = vunpack.c.h.b16 %v688
    %v866 = vunpack.c.l.b16 %v689
    %v867 = vunpack.c.l.b16 %v690
    %v868 = vunpack.c.h.b16 %v690
    %v869 = vunpack.c.l.b16 %v691
    %v870 = vunpack.c.l.b16 %v692
    %v871 = vunpack.c.h.b16 %v692
    %v872 = vunpack.c.l.b16 %v693
    %v873 = vunpack.c.l.b16 %v694
    %v874 = vunpack.c.h.b16 %v694
    %v875 = vunpack.c.l.b16 %v695
    %v876 = vunpack.c.l.b16 %v696
    %v877 = vunpack.c.h.b16 %v696
    %v878 = vunpack.c.l.b16 %v697
    %v879 = vunpack.c.l.b16 %v698
    %v880 = vunpack.c.h.b16 %v698
    %v881 = vunpack.c.l.b16 %v699
    %v882 = vunpack.c.l.b16 %v700
    %v883 = vunpack.c.h.b16 %v700
    %v884 = vunpack.c.l.b16 %v701
    %v885 = vunpack.c.l.b16 %v702
    %v886 = vunpack.c.h.b16 %v702
    %v887 = vunpack.c.l.b16 %v703
    %v888 = vunpack.c.l.b16 %v704
    %v889 = vunpack.c.h.b16 %v704
    %v890 = vunpack.c.l.b16 %v705
    %v891 = vunpack.c.l.b16 %v706
    %v892 = vunpack.c.h.b16 %v706
    %v893 = vunpack.c.l.b16 %v707
    %v894 = vunpack.c.l.b16 %v708
    %v895 = vunpack.c.h.b16 %v708
    %v896 = vunpack.c.l.b16 %v709
    %v897 = vunpack.c.l.b16 %v710
    %v898 = vunpack.c.h.b16 %v710
    %v899 = vunpack.c.l.b16 %v711
    %v900 = vunpack.c.l.b16 %v712
    %v901 = vunpack.c.h.b16 %v712
    %v902 = vunpack.c.l.b16 %v713
    %v903 = vunpack.c.l.b16 %v714
    %v904 = vunpack.c.h.b16 %v714
    %v905 = vunpack.c.l.b16 %v715
    %v906 = vunpack.c.l.b16 %v716
    %v907 = vunpack.c.h.b16 %v716
    %v908 = vunpack.c.l.b16 %v717
    %v909 = vunpack.c.l.b16 %v718
    %v910 = vunpack.c.h.b16 %v718
    %v911 = vunpack.c.l.b16 %v719
    %v912 = vunpack.c.l.b16 %v720
    %v913 = vunpack.c.h.b16 %v720
    %v914 = vunpack.c.l.b16 %v721
    %v915 = vunpack.c.l.b16 %v722
    %v916 = vunpack.c.h.b16 %v722
    %v917 = vunpack.c.l.b16 %v723
    %v918 = vunpack.c.l.b16 %v724
    %v919 = vunpack.c.h.b16 %v724
    %v920 = vunpack.c.l.b16 %v725
    %v921 = vunpack.c.l.b16 %v726
    %v922 = vunpack.c.h.b16 %v726
    %v923 = vunpack.c.l.b16 %v727
    %v924 = vunpack.c.l.b16 %v728
    %v925 = vunpack.c.h.b16 %v728
    %v926 = vunpack.c.l.b16 %v729
    %v927 = vunpack.c.l.b16 %v730
    %v928 = vunpack.c.h.b16 %v730
    %v929 = vunpack.c.l.b16 %v731
    %v930 = vunpack.c.l.b16 %v732
    %v931 = vunpack.c.h.b16 %v732
    %v932 = vunpack.c.l.b16 %v733
    %v933 = vunpack.c.l.b16 %v734
    %v934 = vunpack.c.h.b16 %v734
    %v935 = vunpack.c.l.b16 %v735
    %v936 = vunpack.c.l.b16 %v736
    %v937 = vunpack.c.h.b16 %v736
    %v938 = vunpack.c.l.b16 %v737
    %v939 = vunpack.c.l.b16 %v738
    %v940 = vunpack.c.h.b16 %v738
    %v941 = vunpack.c.l.b16 %v739
    %v942 = vunpack.c.l.b16 %v740
    %v943 = vunpack.c.h.b16 %v740
    %v944 = vunpack.c.l.b16 %v741
    %v945 = vunpack.c.l.b16 %v742
    %v946 = vunpack.c.h.b16 %v742
    %v947 = vunpack.c.l.b16 %v743
    %v948 = vunpack.c.l.b16 %v744
    %v949 = vunpack.c.h.b16 %v744
    %v950 = vunpack.c.l.b16 %v745
    %v951 = vunpack.c.l.b16 %v746
    %v952 = vunpack.c.h.b16 %v746
    %v953 = vunpack.c.l.b16 %v747
    %v954 = vunpack.c.l.b16 %v748
    %v955 = vunpack.c.h.b16 %v748
    %v956 = vunpack.c.l.b16 %v749
    %v957 = vunpack.c.l.b16 %v750
    %v958 = vunpack.c.h.b16 %v750
    %v959 = vunpack.c.l.b16 %v751
    %v960 = vpack.c.b16 %v843, %v840
    %v961 = vpack.c.b16 %v844, %v841
    %v962 = vpack.c.b16 %v845, %v842
    %v963 = vpack.c.b16 %v849, %v846
    %v964 = vpack.c.b16 %v850, %v847
    %v965 = vpack.c.b16 %v851, %v848
    %v966 = vpack.c.b16 %v855, %v852
    %v967 = vpack.c.b16 %v856, %v853
    %v968 = vpack.c.b16 %v857, %v854
    %v969 = vpack.c.b16 %v861, %v858
    %v970 = vpack.c.b16 %v862, %v859
    %v971 = vpack.c.b16 %v863, %v860
    %v972 = vpack.c.b16 %v867, %v864
    %v973 = vpack.c.b16 %v868, %v865
    %v974 = vpack.c.b16 %v869, %v866
    %v975 = vpack.c.b16 %v873, %v870
    %v976 = vpack.c.b16 %v874, %v871
    %v977 = vpack.c.b16 %v875, %v872
    %v978 = vpack.c.b16 %v879, %v876
    %v979 = vpack.c.b16 %v880, %v877
    %v980 = vpack.c.b16 %v881, %v878
    %v981 = vpack.c.b16 %v885, %v882
    %v982 = vpack.c.b16 %v886, %v883
    %v983 = vpack.c.b16 %v887, %v884
    %v984 = vpack.c.b16 %v891, %v888
    %v985 = vpack.c.b16 %v892, %v889
    %v986 = vpack.c.b16 %v893, %v890
    %v987 = vpack.c.b16 %v897, %v894
    %v988 = vpack.c.b16 %v898, %v895
    %v989 = vpack.c.b16 %v899, %v896
    %v990 = vpack.c.b16 %v903, %v900
    %v991 = vpack.c.b16 %v904, %v901
    %v992 = vpack.c.b16 %v905, %v902
    %v993 = vpack.c.b16 %v909, %v906
    %v994 = vpack.c.b16 %v910, %v907
    %v995 = vpack.c.b16 %v911, %v908
    %v996 = vpack.c.b16 %v915, %v912
    %v997 = vpack.c.b16 %v916, %v913
    %v998 = vpack.c.b16 %v917, %v914
    %v999 = vpack.c.b16 %v921, %v918
    %v1000 = vpack.c.b16 %v922, %v919
    %v1001 = vpack.c.b16 %v923, %v920
    %v1002 = vpack.c.b16 %v927, %v924
    %v1003 = vpack.c.b16 %v928, %v925
    %v1004 = vpack.c.b16 %v929, %v926
    %v1005 = vpack.c.b16 %v933, %v930
    %v1006 = vpack.c.b16 %v934, %v931
    %v1007 = vpack.c.b16 %v935, %v932
    %v1008 = vpack.c.b16 %v939, %v936
    %v1009 = vpack.c.b16 %v940, %v937
    %v1010 = vpack.c.b16 %v941, %v938
    %v1011 = vpack.c.b16 %v945, %v942
    %v1012 = vpack.c.b16 %v946, %v943
    %v1013 = vpack.c.b16 %v947, %v944
    %v1014 = vpack.c.b16 %v951, %v948
    %v1015 = vpack.c.b16 %v952, %v949
    %v1016 = vpack.c.b16 %v953, %v950
    %v1017 = vpack.c.b16 %v957, %v954
    %v1018 = vpack.c.b16 %v958, %v955
    %v1019 = vpack.c.b16 %v959, %v956
    %v1081 = vsel %vm521, %v671, 0
    %1083 = vmatpush.bf16.msra.mxu0 %v981
    %1084 = vmatpush.bf16.msra.mxu0 %v978
    %1085 = vmatpush.bf16.msra.mxu0 %v975
    %1086 = vmatpush.bf16.msra.mxu0 %v972
    %1087 = vmatpush.bf16.msra.mxu0 %v969
    %1088 = vmatpush.bf16.msra.mxu0 %v966
    %1089 = vmatpush.bf16.msra.mxu0 %v963
    %1090 = vmatpush.bf16.msra.mxu0 %v960
    %1091 = vmatmul.bf16.gmra.mxu0 %v669
    %v1092 = vpop.f32.mrf.mxu0
    %v1093 = vadd.f32 %v754, %v1092
    %v1094 = vpop.f32.mrf.mxu0
    %v1095 = vadd.f32 %v754, %v1094
    %1096 = vdwg.mxu0
    %1097 = vmatpush.bf16.msra.mxu0 %v1005
    %1098 = vmatpush.bf16.msra.mxu0 %v1002
    %1099 = vmatpush.bf16.msra.mxu0 %v999
    %1100 = vmatpush.bf16.msra.mxu0 %v996
    %1101 = vmatpush.bf16.msra.mxu0 %v993
    %1102 = vmatpush.bf16.msra.mxu0 %v990
    %1103 = vmatpush.bf16.msra.mxu0 %v987
    %1104 = vmatpush.bf16.msra.mxu0 %v984
    %1105 = vmatmul.bf16.gmra.mxu0 %v670
    %v1106 = vpop.f32.mrf.mxu0
    %v1107 = vadd.f32 %v1093, %v1106
    %v1108 = vpop.f32.mrf.mxu0
    %v1109 = vadd.f32 %v1095, %v1108
    %1110 = vdwg.mxu0
    %1111 = vmatpush.bf16.msra.mxu0 0
    %1112 = vmatpush.bf16.msra.mxu0 0
    %1113 = vmatpush.bf16.msra.mxu0 0
    %1114 = vmatpush.bf16.msra.mxu0 0
    %1115 = vmatpush.bf16.msra.mxu0 %v1017
    %1116 = vmatpush.bf16.msra.mxu0 %v1014
    %1117 = vmatpush.bf16.msra.mxu0 %v1011
    %1118 = vmatpush.bf16.msra.mxu0 %v1008
    %1119 = vmatmul.bf16.gmra.mxu0 %v1081
    %v1120 = vpop.f32.mrf.mxu0
    %v1121 = vadd.f32 %v1107, %v1120
    %v1122 = vpop.f32.mrf.mxu0
    %v1123 = vadd.f32 %v1109, %v1122
    %1124 = vdwg.mxu0
    %1125 = vmatpush.bf16.msra.mxu0 %v982
    %1126 = vmatpush.bf16.msra.mxu0 %v979
    %1127 = vmatpush.bf16.msra.mxu0 %v976
    %1128 = vmatpush.bf16.msra.mxu0 %v973
    %1129 = vmatpush.bf16.msra.mxu0 %v970
    %1130 = vmatpush.bf16.msra.mxu0 %v967
    %1131 = vmatpush.bf16.msra.mxu0 %v964
    %1132 = vmatpush.bf16.msra.mxu0 %v961
    %1133 = vmatmul.bf16.gmra.mxu0 %v669
    %v1134 = vpop.f32.mrf.mxu0
    %v1135 = vadd.f32 %v755, %v1134
    %v1136 = vpop.f32.mrf.mxu0
    %v1137 = vadd.f32 %v755, %v1136
    %1138 = vdwg.mxu0
    %1139 = vmatpush.bf16.msra.mxu0 %v1006
    %1140 = vmatpush.bf16.msra.mxu0 %v1003
    %1141 = vmatpush.bf16.msra.mxu0 %v1000
    %1142 = vmatpush.bf16.msra.mxu0 %v997
    %1143 = vmatpush.bf16.msra.mxu0 %v994
    %1144 = vmatpush.bf16.msra.mxu0 %v991
    %1145 = vmatpush.bf16.msra.mxu0 %v988
    %1146 = vmatpush.bf16.msra.mxu0 %v985
    %1147 = vmatmul.bf16.gmra.mxu0 %v670
    %v1148 = vpop.f32.mrf.mxu0
    %v1149 = vadd.f32 %v1135, %v1148
    %v1150 = vpop.f32.mrf.mxu0
    %v1151 = vadd.f32 %v1137, %v1150
    %1152 = vdwg.mxu0
    %1153 = vmatpush.bf16.msra.mxu0 0
    %1154 = vmatpush.bf16.msra.mxu0 0
    %1155 = vmatpush.bf16.msra.mxu0 0
    %1156 = vmatpush.bf16.msra.mxu0 0
    %1157 = vmatpush.bf16.msra.mxu0 %v1018
    %1158 = vmatpush.bf16.msra.mxu0 %v1015
    %1159 = vmatpush.bf16.msra.mxu0 %v1012
    %1160 = vmatpush.bf16.msra.mxu0 %v1009
    %1161 = vmatmul.bf16.gmra.mxu0 %v1081
    %v1162 = vpop.f32.mrf.mxu0
    %v1163 = vadd.f32 %v1149, %v1162
    %v1164 = vpop.f32.mrf.mxu0
    %v1165 = vadd.f32 %v1151, %v1164
    %1166 = vdwg.mxu0
    %1167 = vmatpush.bf16.msra.mxu0 %v983
    %1168 = vmatpush.bf16.msra.mxu0 %v980
    %1169 = vmatpush.bf16.msra.mxu0 %v977
    %1170 = vmatpush.bf16.msra.mxu0 %v974
    %1171 = vmatpush.bf16.msra.mxu0 %v971
    %1172 = vmatpush.bf16.msra.mxu0 %v968
    %1173 = vmatpush.bf16.msra.mxu0 %v965
    %1174 = vmatpush.bf16.msra.mxu0 %v962
    %1175 = vmatmul.bf16.gmra.mxu0 %v669
    %v1176 = vpop.f32.mrf.mxu0
    %v1177 = vadd.f32 %v756, %v1176
    %v1178 = vpop.f32.mrf.mxu0
    %v1179 = vadd.f32 %v756, %v1178
    %1180 = vdwg.mxu0
    %1181 = vmatpush.bf16.msra.mxu0 %v1007
    %1182 = vmatpush.bf16.msra.mxu0 %v1004
    %1183 = vmatpush.bf16.msra.mxu0 %v1001
    %1184 = vmatpush.bf16.msra.mxu0 %v998
    %1185 = vmatpush.bf16.msra.mxu0 %v995
    %1186 = vmatpush.bf16.msra.mxu0 %v992
    %1187 = vmatpush.bf16.msra.mxu0 %v989
    %1188 = vmatpush.bf16.msra.mxu0 %v986
    %1189 = vmatmul.bf16.gmra.mxu0 %v670
    %v1190 = vpop.f32.mrf.mxu0
    %v1191 = vadd.f32 %v1177, %v1190
    %v1192 = vpop.f32.mrf.mxu0
    %v1193 = vadd.f32 %v1179, %v1192
    %1194 = vdwg.mxu0
    %1195 = vmatpush.bf16.msra.mxu0 0
    %1196 = vmatpush.bf16.msra.mxu0 0
    %1197 = vmatpush.bf16.msra.mxu0 0
    %1198 = vmatpush.bf16.msra.mxu0 0
    %1199 = vmatpush.bf16.msra.mxu0 %v1019
    %1200 = vmatpush.bf16.msra.mxu0 %v1016
    %1201 = vmatpush.bf16.msra.mxu0 %v1013
    %1202 = vmatpush.bf16.msra.mxu0 %v1010
    %1203 = vmatmul.bf16.gmra.mxu0 %v1081
    %v1204 = vpop.f32.mrf.mxu0
    %v1205 = vadd.f32 %v1191, %v1204
    %v1206 = vpop.f32.mrf.mxu0
    %v1207 = vadd.f32 %v1193, %v1206
    %1208 = vdwg.mxu0
    %vm1209 = vcmp.gt.f32.partialorder %v1121, 0.0
    %vm1210 = vcmp.gt.f32.partialorder %v1163, 0.0
    %vm1211 = vcmp.gt.f32.partialorder %v1205, 0.0
    %vm1212 = vcmp.gt.f32.partialorder %v1123, 0.0
    %vm1213 = vcmp.gt.f32.partialorder %v1165, 0.0
    %vm1214 = vcmp.gt.f32.partialorder %v1207, 0.0
    %v1215 = vmul.f32 %v1121, 0.01
    %v1216 = vmul.f32 %v1163, 0.01
    %v1217 = vmul.f32 %v1205, 0.01
    %v1218 = vmul.f32 %v1123, 0.01
    %v1219 = vmul.f32 %v1165, 0.01
    %v1220 = vmul.f32 %v1207, 0.01
    %v1221 = vsel %vm1209, %v1121, %v1215
    %v1222 = vsel %vm1210, %v1163, %v1216
    %v1223 = vsel %vm1211, %v1205, %v1217
    %v1224 = vsel %vm1212, %v1123, %v1218
    %v1225 = vsel %vm1213, %v1165, %v1219
    %v1226 = vsel %vm1214, %v1207, %v1220
    %v1227 = vpack.c.bf16 %v1224, %v1221
    %v1228 = vpack.c.bf16 %v1225, %v1222
    %v1229 = vpack.c.bf16 %v1226, %v1223
    %v1230 = vld [vmem:[#allocation10] sm:$0xf]
    %v1231 = vld [vmem:[#allocation10 + $0x4] sm:$0xf]
    %v1232 = vld [vmem:[#allocation10 + $0x8] sm:$0xf]
    %v1233 = vld [vmem:[#allocation10 + $0xc] sm:$0xf]
    %v1234 = vld [vmem:[#allocation10 + $0x10] sm:$0xf]
    %v1235 = vld [vmem:[#allocation10 + $0x14] sm:$0xf]
    %v1236 = vld [vmem:[#allocation10 + $0x18] sm:$0xf]
    %v1237 = vld [vmem:[#allocation10 + $0x1c] sm:$0xf]
    %v1238 = vld [vmem:[#allocation10 + $0x20] sm:$0xf]
    %v1239 = vld [vmem:[#allocation10 + $0x24] sm:$0xf]
    %v1240 = vld [vmem:[#allocation10 + $0x28] sm:$0xf]
    %v1241 = vld [vmem:[#allocation10 + $0x2c] sm:$0xf]
    %v1242 = vld [vmem:[#allocation10 + $0x30] sm:$0xf]
    %v1243 = vld [vmem:[#allocation10 + $0x34] sm:$0xf]
    %v1244 = vld [vmem:[#allocation10 + $0x38] sm:$0xf]
    %v1245 = vld [vmem:[#allocation10 + $0x3c] sm:$0xf]
    %v1246 = vld [vmem:[#allocation10 + $0x40] sm:$0xf]
    %v1247 = vld [vmem:[#allocation10 + $0x44] sm:$0xf]
    %v1248 = vld [vmem:[#allocation10 + $0x48] sm:$0xf]
    %v1249 = vld [vmem:[#allocation10 + $0x4c] sm:$0xf]
    %v1250 = vld [vmem:[#allocation10 + $0x50] sm:$0xf]
    %v1251 = vld [vmem:[#allocation10 + $0x54] sm:$0xf]
    %v1252 = vld [vmem:[#allocation10 + $0x58] sm:$0xf]
    %v1253 = vld [vmem:[#allocation10 + $0x5c] sm:$0xf]
    %v1254 = vld [vmem:[#allocation10 + $0x60] sm:$0xf]
    %v1255 = vld [vmem:[#allocation10 + $0x64] sm:$0xf]
    %v1256 = vld [vmem:[#allocation10 + $0x68] sm:$0xf]
    %v1257 = vld [vmem:[#allocation10 + $0x6c] sm:$0xf]
    %v1258 = vld [vmem:[#allocation10 + $0x70] sm:$0xf]
    %v1259 = vld [vmem:[#allocation10 + $0x74] sm:$0xf]
    %v1260 = vld [vmem:[#allocation10 + $0x78] sm:$0xf]
    %v1261 = vld [vmem:[#allocation10 + $0x7c] sm:$0xf]
    %v1262 = vld [vmem:[#allocation10 + $0x80] sm:$0xf]
    %v1263 = vld [vmem:[#allocation10 + $0x84] sm:$0xf]
    %v1264 = vld [vmem:[#allocation10 + $0x88] sm:$0xf]
    %v1265 = vld [vmem:[#allocation10 + $0x8c] sm:$0xf]
    %v1266 = vld [vmem:[#allocation10 + $0x90] sm:$0xf]
    %v1267 = vld [vmem:[#allocation10 + $0x94] sm:$0xf]
    %v1268 = vld [vmem:[#allocation10 + $0x98] sm:$0xf]
    %v1269 = vld [vmem:[#allocation10 + $0x9c] sm:$0xf]
    %v1270 = vld [vmem:[%s6] sm:$0x1]
    %v1272 = vperm.slane %v1270, 0
    %v1314 = vunpack.c.l.b16 %v1230
    %v1315 = vunpack.c.l.b16 %v1231
    %v1316 = vunpack.c.l.b16 %v1232
    %v1317 = vunpack.c.l.b16 %v1233
    %v1318 = vunpack.c.l.b16 %v1234
    %v1319 = vunpack.c.l.b16 %v1235
    %v1320 = vunpack.c.l.b16 %v1236
    %v1321 = vunpack.c.l.b16 %v1237
    %v1322 = vunpack.c.l.b16 %v1238
    %v1323 = vunpack.c.l.b16 %v1239
    %v1324 = vunpack.c.l.b16 %v1240
    %v1325 = vunpack.c.l.b16 %v1241
    %v1326 = vunpack.c.l.b16 %v1242
    %v1327 = vunpack.c.l.b16 %v1243
    %v1328 = vunpack.c.l.b16 %v1244
    %v1329 = vunpack.c.l.b16 %v1245
    %v1330 = vunpack.c.l.b16 %v1246
    %v1331 = vunpack.c.l.b16 %v1247
    %v1332 = vunpack.c.l.b16 %v1248
    %v1333 = vunpack.c.l.b16 %v1249
    %v1334 = vunpack.c.l.b16 %v1250
    %v1335 = vunpack.c.l.b16 %v1251
    %v1336 = vunpack.c.l.b16 %v1252
    %v1337 = vunpack.c.l.b16 %v1253
    %v1338 = vunpack.c.l.b16 %v1254
    %v1339 = vunpack.c.l.b16 %v1255
    %v1340 = vunpack.c.l.b16 %v1256
    %v1341 = vunpack.c.l.b16 %v1257
    %v1342 = vunpack.c.l.b16 %v1258
    %v1343 = vunpack.c.l.b16 %v1259
    %v1344 = vunpack.c.l.b16 %v1260
    %v1345 = vunpack.c.l.b16 %v1261
    %v1346 = vunpack.c.l.b16 %v1262
    %v1347 = vunpack.c.l.b16 %v1263
    %v1348 = vunpack.c.l.b16 %v1264
    %v1349 = vunpack.c.l.b16 %v1265
    %v1350 = vunpack.c.l.b16 %v1266
    %v1351 = vunpack.c.l.b16 %v1267
    %v1352 = vunpack.c.l.b16 %v1268
    %v1353 = vunpack.c.l.b16 %v1269
    %v1354 = vpack.c.b16 %v1315, %v1314
    %v1355 = vpack.c.b16 %v1317, %v1316
    %v1356 = vpack.c.b16 %v1319, %v1318
    %v1357 = vpack.c.b16 %v1321, %v1320
    %v1358 = vpack.c.b16 %v1323, %v1322
    %v1359 = vpack.c.b16 %v1325, %v1324
    %v1360 = vpack.c.b16 %v1327, %v1326
    %v1361 = vpack.c.b16 %v1329, %v1328
    %v1362 = vpack.c.b16 %v1331, %v1330
    %v1363 = vpack.c.b16 %v1333, %v1332
    %v1364 = vpack.c.b16 %v1335, %v1334
    %v1365 = vpack.c.b16 %v1337, %v1336
    %v1366 = vpack.c.b16 %v1339, %v1338
    %v1367 = vpack.c.b16 %v1341, %v1340
    %v1368 = vpack.c.b16 %v1343, %v1342
    %v1369 = vpack.c.b16 %v1345, %v1344
    %v1370 = vpack.c.b16 %v1347, %v1346
    %v1371 = vpack.c.b16 %v1349, %v1348
    %v1372 = vpack.c.b16 %v1351, %v1350
    %v1373 = vpack.c.b16 %v1353, %v1352
    %v1395 = vsel %vm521, %v1229, 0
    %1397 = vmatpush.bf16.msra.mxu0 %v1361
    %1398 = vmatpush.bf16.msra.mxu0 %v1360
    %1399 = vmatpush.bf16.msra.mxu0 %v1359
    %1400 = vmatpush.bf16.msra.mxu0 %v1358
    %1401 = vmatpush.bf16.msra.mxu0 %v1357
    %1402 = vmatpush.bf16.msra.mxu0 %v1356
    %1403 = vmatpush.bf16.msra.mxu0 %v1355
    %1404 = vmatpush.bf16.msra.mxu0 %v1354
    %1405 = vmatmul.bf16.gmra.mxu0 %v1227
    %v1406 = vpop.f32.mrf.mxu0
    %v1407 = vadd.f32 %v1272, %v1406
    %v1408 = vpop.f32.mrf.mxu0
    %v1409 = vadd.f32 %v1272, %v1408
    %1410 = vdwg.mxu0
    %1411 = vmatpush.bf16.msra.mxu0 %v1369
    %1412 = vmatpush.bf16.msra.mxu0 %v1368
    %1413 = vmatpush.bf16.msra.mxu0 %v1367
    %1414 = vmatpush.bf16.msra.mxu0 %v1366
    %1415 = vmatpush.bf16.msra.mxu0 %v1365
    %1416 = vmatpush.bf16.msra.mxu0 %v1364
    %1417 = vmatpush.bf16.msra.mxu0 %v1363
    %1418 = vmatpush.bf16.msra.mxu0 %v1362
    %1419 = vmatmul.bf16.gmra.mxu0 %v1228
    %v1420 = vpop.f32.mrf.mxu0
    %v1421 = vadd.f32 %v1407, %v1420
    %v1422 = vpop.f32.mrf.mxu0
    %v1423 = vadd.f32 %v1409, %v1422
    %1424 = vdwg.mxu0
    %1425 = vmatpush.bf16.msra.mxu0 0
    %1426 = vmatpush.bf16.msra.mxu0 0
    %1427 = vmatpush.bf16.msra.mxu0 0
    %1428 = vmatpush.bf16.msra.mxu0 0
    %1429 = vmatpush.bf16.msra.mxu0 %v1373
    %1430 = vmatpush.bf16.msra.mxu0 %v1372
    %1431 = vmatpush.bf16.msra.mxu0 %v1371
    %1432 = vmatpush.bf16.msra.mxu0 %v1370
    %1433 = vmatmul.bf16.gmra.mxu0 %v1395
    %v1434 = vpop.f32.mrf.mxu0
    %v1435 = vadd.f32 %v1421, %v1434
    %v1436 = vpop.f32.mrf.mxu0
    %v1437 = vadd.f32 %v1423, %v1436
    %1438 = vdwg.mxu0
    %1439 = vmax.xlane.f32.xlu0 %v1435
    %v1440 = vpop.xlane.xlu0 %1439
    %1441 = vmax.xlane.f32.xlu0 %v1437
    %v1442 = vpop.xlane.xlu0 %1441
    %v1443 = vsub.f32 %v1435, %v1440
    %v1444 = vsub.f32 %v1437, %v1442
    %v1445 = vmul.f32 %v1443, 1.442695
    %v1446 = vpow.pop %v1445
    %v1447 = vmul.f32 %v1444, 1.442695
    %v1448 = vpow.pop %v1447
    %1449 = vadd.xlane.f32.xlu0 %v1446
    %v1450 = vpop.xlane.xlu0 %1449
    %1451 = vadd.xlane.f32.xlu0 %v1448
    %v1452 = vpop.xlane.xlu0 %1451
    %v1453 = vrcp.pop %v1450
    %v1454 = vmul.f32 %v1450, %v1453
    %v1455 = vsub.f32 1.0, %v1454
    %v1456 = vmul.f32 %v1453, %v1455
    %v1457 = vadd.f32 %v1453, %v1456
    %vm1458 = vweird.f32 %v1450
    %vm1459 = vweird.f32 %v1453
    %vm1460 = vmor %vm1458, %vm1459
    %v1461 = vsel %vm1460, %v1453, %v1457
    %v1462 = vand.u32 2147483647, %v1450
    %vm1463 = vcmp.eq.f32.partialorder %v1462, 8.507059e+37
    %v1464 = vand.u32 %v1450, 2147483648
    %v1465 = vor.u32 1.1754944e-38, %v1464
    %v1466 = vsel %vm1463, %v1465, %v1461
    %v1467 = vmul.f32 %v1446, %v1466
    %v1468 = vrcp.pop %v1452
    %v1469 = vmul.f32 %v1452, %v1468
    %v1470 = vsub.f32 1.0, %v1469
    %v1471 = vmul.f32 %v1468, %v1470
    %v1472 = vadd.f32 %v1468, %v1471
    %vm1473 = vweird.f32 %v1452
    %vm1474 = vweird.f32 %v1468
    %vm1475 = vmor %vm1473, %vm1474
    %v1476 = vsel %vm1475, %v1468, %v1472
    %v1477 = vand.u32 2147483647, %v1452
    %vm1478 = vcmp.eq.f32.partialorder %v1477, 8.507059e+37
    %v1479 = vand.u32 %v1452, 2147483648
    %v1480 = vor.u32 1.1754944e-38, %v1479
    %v1481 = vsel %vm1478, %v1480, %v1476
    %v1482 = vmul.f32 %v1448, %v1481
    %v1483 = vpack.c.bf16 %v1467, %v1467
    %v1484 = vpack.c.bf16 %v1482, %v1482
    %1485 = vst [vmem:[#allocation11] sm:$0xf] %v1483
    %1486 = vst [vmem:[#allocation11 + $0x4] sm:$0xf] %v1484
    // Predicated region
    $region50: #{tpu_custom_call.1} parent=1 // pred_check
      _
    $region51: #{tpu_custom_call.1} parent=1 // pred_check_branch
      %1488 = sbr.rel (0) target = $region53
    $region52: #{tpu_custom_call.1} parent=1 // pred_region
      %1490 = vsyncadd [#allocation4], 0
      %s1491 = sshll.u32 [#allocation11], 4
      %s1492 = int_to_ptr.vmem [resolvable:$true] %s1491
      %s1493 = sshll.u32 %s7, 4
      %s1494 = int_to_ptr.hbm [resolvable:$true] %s1493
      %1499 = dma.vmem_to_hbm [thread:$0]  %s1492, 128, %s1494, [#allocation4], 64, 64, 4
    $region53: #{tpu_custom_call.1} parent=1 // pred_fallthru
      _
    // Predicated region
    $region54: #{tpu_custom_call.1} parent=1 // pred_check
      _
    $region55: #{tpu_custom_call.1} parent=1 // pred_check_branch
      %1501 = sbr.rel (0) target = $region57
    $region56: #{tpu_custom_call.1} parent=1 // pred_region
      %1503 = dma.done [#allocation4], 128
    $region57: #{tpu_custom_call.1} parent=1 // pred_fallthru
      _
    %1504 = vsyncpa [#allocation3], 1
    %1505 = vsyncpa [#allocation6], 1
    %1506 = vsyncpa [#allocation9], 1
    %1507 = vsyncpa [#allocation4], 1

</llo_original>
